<compile_context>
chip_gen: v7x
topology: tpu7x:2x2x1
jax: 0.10.0
libtpu: 0.0.40
codegen_flags: <defaults>
</compile_context>

<pallas_src>
import functools
import math

import jax
import jax.numpy as jnp
from jax.experimental import pallas as pl
from jax.experimental.pallas import tpu as pltpu


# ---------------------------------------------------------------------------
# Pallas kernels
# ---------------------------------------------------------------------------

def _matmul_bn_kernel(w_ref, s_ref, b_ref, x_ref, o_ref):
    """out = (W @ X_im2col) * scale + bias  (BasicConv2d: conv + folded BN)."""
    acc = jnp.dot(w_ref[...], x_ref[...], preferred_element_type=jnp.float32)
    o_ref[...] = (acc * s_ref[...] + b_ref[...]).astype(o_ref.dtype)


def _cat_res_relu_kernel(wc0_ref, wc1_ref, wc2_ref, wc3_ref, sc_ref, bc_ref,
                         wr_ref, sr_ref, br_ref,
                         x0_ref, x1_ref, x2_ref, x3_ref, xr_ref, o_ref):
    """Fused relu(conv_cat(cat([x0..x3], dim=1)) + conv_res(x)).

    The channel concat is folded into the matmul by splitting conv_cat's
    weight matrix into four chunks, so the concatenated tensor never exists.
    """
    acc = jnp.dot(wc0_ref[...], x0_ref[...], preferred_element_type=jnp.float32)
    acc += jnp.dot(wc1_ref[...], x1_ref[...], preferred_element_type=jnp.float32)
    acc += jnp.dot(wc2_ref[...], x2_ref[...], preferred_element_type=jnp.float32)
    acc += jnp.dot(wc3_ref[...], x3_ref[...], preferred_element_type=jnp.float32)
    acc = acc * sc_ref[...] + bc_ref[...]
    res = jnp.dot(wr_ref[...], xr_ref[...], preferred_element_type=jnp.float32)
    acc += res * sr_ref[...] + br_ref[...]
    o_ref[...] = jnp.maximum(acc, 0.0).astype(o_ref.dtype)


# ---------------------------------------------------------------------------
# Wrapper helpers
# ---------------------------------------------------------------------------

_COMPILER_PARAMS = pltpu.CompilerParams(
    dimension_semantics=("parallel", "parallel"),
    vmem_limit_bytes=32 * 1024 * 1024,
)


def _pick_hw_tile(hw):
    """Lane-dense spatial tile: multiple of 128, prefer >=2 tiles (megacore)."""
    if hw % 128 != 0:
        return hw                              # full extent (allowed untiled)
    for t in (2048, 1024, 512, 256, 128):
        if hw % t == 0 and hw // t >= 2:
            return t
    return hw


def _im2col(x, kh, kw, pad_h, pad_w, dil):
    """(N, C, H, W) -> (N, kh*kw*C, H*W); tap-major, channel-minor ordering."""
    n, c, h, w = x.shape
    if kh == 1 and kw == 1 and pad_h == 0 and pad_w == 0:
        return x.reshape(n, c, h * w)
    xp = jnp.pad(x, ((0, 0), (0, 0), (pad_h, pad_h), (pad_w, pad_w)))
    taps = []
    for dy in range(kh):
        for dx in range(kw):
            y0, x0 = dy * dil, dx * dil
            taps.append(xp[:, :, y0:y0 + h, x0:x0 + w])
    return jnp.concatenate(taps, axis=1).reshape(n, kh * kw * c, h * w)


def _flatten_weight(w):
    """(O, C, kh, kw) -> (O, kh*kw*C), matching _im2col ordering."""
    return jnp.transpose(w, (0, 2, 3, 1)).reshape(w.shape[0], -1)


def _conv_bn(x, p):
    """One BasicConv2d as a single Pallas matmul+BN kernel."""
    n, _, h, w = x.shape
    cols = _im2col(x, p["kh"], p["kw"], p["pad"][0], p["pad"][1], p["dil"])
    w_flat = _flatten_weight(p["w"])
    o, k = w_flat.shape
    hw = h * w
    t_hw = _pick_hw_tile(hw)
    grid = (n, hw // t_hw)

    out = pl.pallas_call(
        _matmul_bn_kernel,
        out_shape=jax.ShapeDtypeStruct((n, o, hw), x.dtype),
        grid_spec=pltpu.PrefetchScalarGridSpec(
            num_scalar_prefetch=0,
            grid=grid,
            in_specs=[
                pl.BlockSpec((o, k), lambda b, j: (0, 0)),
                pl.BlockSpec((o, 1), lambda b, j: (0, 0)),
                pl.BlockSpec((o, 1), lambda b, j: (0, 0)),
                pl.BlockSpec((None, k, t_hw), lambda b, j: (b, 0, j)),
            ],
            out_specs=pl.BlockSpec((None, o, t_hw), lambda b, j: (b, 0, j)),
        ),
        compiler_params=_COMPILER_PARAMS,
    )(w_flat, p["scale"].reshape(o, 1), p["bias"].reshape(o, 1), cols)
    return out.reshape(n, o, h, w)


def _cat_res_relu(x_branches, x_in, p_cat, p_res):
    """Fused conv_cat(concat) + conv_res residual + ReLU (concat eliminated)."""
    n, cin, h, w = x_in.shape
    hw = h * w
    oc = x_branches[0].shape[1]
    o = p_cat["w"].shape[0]

    cols = [_im2col(xb, 3, 3, 1, 1, 1) for xb in x_branches]  # (N, 9*oc, HW) each
    kc = cols[0].shape[1]
    w_chunks = [_flatten_weight(p_cat["w"][:, i * oc:(i + 1) * oc])
                for i in range(4)]                            # (O, 9*oc) each
    w_res = p_res["w"].reshape(o, cin)
    xr = x_in.reshape(n, cin, hw)

    t_hw = _pick_hw_tile(hw)
    grid = (n, hw // t_hw)

    wspec = pl.BlockSpec((o, kc), lambda b, j: (0, 0))
    vspec = pl.BlockSpec((o, 1), lambda b, j: (0, 0))
    cspec = pl.BlockSpec((None, kc, t_hw), lambda b, j: (b, 0, j))

    out = pl.pallas_call(
        _cat_res_relu_kernel,
        out_shape=jax.ShapeDtypeStruct((n, o, hw), x_in.dtype),
        grid_spec=pltpu.PrefetchScalarGridSpec(
            num_scalar_prefetch=0,
            grid=grid,
            in_specs=[wspec, wspec, wspec, wspec, vspec, vspec,
                      pl.BlockSpec((o, cin), lambda b, j: (0, 0)), vspec, vspec,
                      cspec, cspec, cspec, cspec,
                      pl.BlockSpec((None, cin, t_hw), lambda b, j: (b, 0, j))],
            out_specs=pl.BlockSpec((None, o, t_hw), lambda b, j: (b, 0, j)),
        ),
        compiler_params=_COMPILER_PARAMS,
    )(*w_chunks,
      p_cat["scale"].reshape(o, 1), p_cat["bias"].reshape(o, 1),
      w_res, p_res["scale"].reshape(o, 1), p_res["bias"].reshape(o, 1),
      *cols, xr)
    return out.reshape(n, o, h, w)


# ---------------------------------------------------------------------------
# RF module (parameters + forward)
# ---------------------------------------------------------------------------

def _init_basic_conv(key, cin, cout, kh, kw, pad, dil):
    kconv, kg, kb, km, kv = jax.random.split(key, 5)
    fan_in = cin * kh * kw
    w = jax.random.normal(kconv, (cout, cin, kh, kw), jnp.float32) / math.sqrt(fan_in)
    gamma = 1.0 + 0.1 * jax.random.normal(kg, (cout,), jnp.float32)
    beta = 0.1 * jax.random.normal(kb, (cout,), jnp.float32)
    mean = 0.1 * jax.random.normal(km, (cout,), jnp.float32)
    var = 0.5 + jax.random.uniform(kv, (cout,), jnp.float32)
    eps = 1e-5
    scale = gamma / jnp.sqrt(var + eps)
    bias = beta - mean * scale
    return {"w": w, "scale": scale, "bias": bias,
            "kh": kh, "kw": kw, "pad": pad, "dil": dil}


class RF:
    """Pallas port of the PyTorch RF module (forward pass, eval-mode BN)."""

    def __init__(self, in_channel, out_channel, key):
        keys = iter(jax.random.split(key, 15))
        mk = lambda cin, cout, kh, kw, pad, dil: _init_basic_conv(
            next(keys), cin, cout, kh, kw, pad, dil)
        ic, oc = in_channel, out_channel
        self.branch0 = [mk(ic, oc, 1, 1, (0, 0), 1)]
        self.branch1 = [mk(ic, oc, 1, 1, (0, 0), 1),
                        mk(oc, oc, 1, 3, (0, 1), 1),
                        mk(oc, oc, 3, 1, (1, 0), 1),
                        mk(oc, oc, 3, 3, (3, 3), 3)]
        self.branch2 = [mk(ic, oc, 1, 1, (0, 0), 1),
                        mk(oc, oc, 1, 5, (0, 2), 1),
                        mk(oc, oc, 5, 1, (2, 0), 1),
                        mk(oc, oc, 3, 3, (5, 5), 5)]
        self.branch3 = [mk(ic, oc, 1, 1, (0, 0), 1),
                        mk(oc, oc, 1, 7, (0, 3), 1),
                        mk(oc, oc, 7, 1, (3, 0), 1),
                        mk(oc, oc, 3, 3, (7, 7), 7)]
        self.conv_cat = mk(4 * oc, oc, 3, 3, (1, 1), 1)
        self.conv_res = mk(ic, oc, 1, 1, (0, 0), 1)

    @staticmethod
    def _seq(layers, x):
        for p in layers:
            x = _conv_bn(x, p)
        return x

    def __call__(self, x):
        x0 = self._seq(self.branch0, x)
        x1 = self._seq(self.branch1, x)
        x2 = self._seq(self.branch2, x)
        x3 = self._seq(self.branch3, x)
        # relu(conv_cat(cat([x0..x3], dim=1)) + conv_res(x)); concat fused away.
        return _cat_res_relu((x0, x1, x2, x3), x, self.conv_cat, self.conv_res)

    # -------- pure-JAX reference (mirrors the torch forward exactly) --------
    @staticmethod
    def _conv_bn_ref(x, p):
        y = jax.lax.conv_general_dilated(
            x, p["w"], window_strides=(1, 1),
            padding=((p["pad"][0], p["pad"][0]), (p["pad"][1], p["pad"][1])),
            rhs_dilation=(p["dil"], p["dil"]),
            dimension_numbers=("NCHW", "OIHW", "NCHW"))
        return y * p["scale"][None, :, None, None] + p["bias"][None, :, None, None]

    def reference(self, x):
        seq = lambda layers, z: functools.reduce(self._conv_bn_ref, layers, z)
        x0 = seq(self.branch0, x)
        x1 = seq(self.branch1, x)
        x2 = seq(self.branch2, x)
        x3 = seq(self.branch3, x)
        x_cat = self._conv_bn_ref(
            jnp.concatenate([x0, x1, x2, x3], axis=1), self.conv_cat)
        return jnp.maximum(x_cat + self._conv_bn_ref(x, self.conv_res), 0.0)


if __name__ == "__main__":
    key = jax.random.PRNGKey(0)
    kx, kp = jax.random.split(key)

    N, C_IN, C_OUT, H, W = 2, 32, 16, 16, 16       # H*W = 256 -> lane-dense
    x = jax.random.normal(kx, (N, C_IN, H, W), dtype=jnp.float32)

    rf = RF(C_IN, C_OUT, kp)
    out = jax.block_until_ready(rf(x))
    ref = jax.block_until_ready(rf.reference(x))

    assert out.shape == (N, C_OUT, H, W)
    max_err = float(jnp.max(jnp.abs(out - ref)))
    assert max_err < 5e-2, f"max abs error {max_err}"
    print("KERNEL_OK")
</pallas_src>

<mosaic_0001>
module attributes {stable_mosaic.version = 11 : i64} {
  func.func @_matmul_bn_kernel(%arg0: i32, %arg1: i32, %arg2: memref<16x32xf32, #tpu.memory_space<vmem>>, %arg3: memref<16x1xf32, #tpu.memory_space<vmem>>, %arg4: memref<16x1xf32, #tpu.memory_space<vmem>>, %arg5: memref<1x32x128xf32, #tpu.memory_space<vmem>>, %arg6: memref<1x16x128xf32, #tpu.memory_space<vmem>>) attributes {dimension_semantics = [#tpu.dimension_semantics<parallel>, #tpu.dimension_semantics<parallel>], iteration_bounds = array<i64: 2, 2>, scalar_prefetch = 0 : i64, scratch_operands = 0 : i64, tpu.core_type = #tpu.core_type<tc>, window_params = [{pipeline_mode = #tpu.pipeline_mode<synchronous>, transform_indices = @transform_0, window_bounds = array<i64: 16, 32>}, {pipeline_mode = #tpu.pipeline_mode<synchronous>, transform_indices = @transform_1, window_bounds = array<i64: 16, 1>}, {pipeline_mode = #tpu.pipeline_mode<synchronous>, transform_indices = @transform_2, window_bounds = array<i64: 16, 1>}, {transform_indices = @transform_3, window_bounds = array<i64: 1, 32, 128>}, {transform_indices = @transform_4, window_bounds = array<i64: 1, 16, 128>}]} {
    %c0 = arith.constant 0 : index
    %c0_0 = arith.constant 0 : index
    %0 = vector.load %arg2[%c0, %c0_0] : memref<16x32xf32, #tpu.memory_space<vmem>>, vector<16x32xf32>
    %c0_1 = arith.constant 0 : index
    %c0_2 = arith.constant 0 : index
    %c0_3 = arith.constant 0 : index
    %1 = vector.load %arg5[%c0_1, %c0_2, %c0_3] : memref<1x32x128xf32, #tpu.memory_space<vmem>>, vector<1x32x128xf32>
    %2 = vector.shape_cast %1 : vector<1x32x128xf32> to vector<32x128xf32>
    %cst = arith.constant dense<0.000000e+00> : vector<16x128xf32>
    %3 = tpu.matmul %0, %2, %cst {dimension_numbers = #tpu.dot_dimension_numbers<[1], [0], [0], [1], [0, 0, 1, 1], [], []>} : vector<16x32xf32>, vector<32x128xf32>, vector<16x128xf32> -> vector<16x128xf32>
    %c0_4 = arith.constant 0 : index
    %c0_5 = arith.constant 0 : index
    %4 = vector.load %arg3[%c0_4, %c0_5] : memref<16x1xf32, #tpu.memory_space<vmem>>, vector<16x1xf32>
    %5 = vector.broadcast %4 : vector<16x1xf32> to vector<16x128xf32>
    %6 = arith.mulf %3, %5 : vector<16x128xf32>
    %c0_6 = arith.constant 0 : index
    %c0_7 = arith.constant 0 : index
    %7 = vector.load %arg4[%c0_6, %c0_7] : memref<16x1xf32, #tpu.memory_space<vmem>>, vector<16x1xf32>
    %8 = vector.broadcast %7 : vector<16x1xf32> to vector<16x128xf32>
    %9 = arith.addf %6, %8 : vector<16x128xf32>
    %c0_8 = arith.constant 0 : index
    %c0_9 = arith.constant 0 : index
    %c0_10 = arith.constant 0 : index
    %10 = vector.load %arg6[%c0_8, %c0_9, %c0_10] : memref<1x16x128xf32, #tpu.memory_space<vmem>>, vector<1x16x128xf32>
    %11 = vector.shape_cast %10 : vector<1x16x128xf32> to vector<16x128xf32>
    %12 = vector.shape_cast %9 : vector<16x128xf32> to vector<1x16x128xf32>
    tpu.vector_store %arg6[%c0_8, %c0_9, %c0_10], %12 {strides = array<i32>} : memref<1x16x128xf32, #tpu.memory_space<vmem>>, vector<1x16x128xf32>,
    return
  }
  func.func @transform_0(%arg0: i32, %arg1: i32) -> (i32, i32) {
    %c0_i32 = arith.constant 0 : i32
    %c0_i32_0 = arith.constant 0 : i32
    %c0_i32_1 = arith.constant 0 : i32
    return %c0_i32, %c0_i32_0 : i32, i32
  }
  func.func @transform_1(%arg0: i32, %arg1: i32) -> (i32, i32) {
    %c0_i32 = arith.constant 0 : i32
    %c0_i32_0 = arith.constant 0 : i32
    %c0_i32_1 = arith.constant 0 : i32
    return %c0_i32, %c0_i32_0 : i32, i32
  }
  func.func @transform_2(%arg0: i32, %arg1: i32) -> (i32, i32) {
    %c0_i32 = arith.constant 0 : i32
    %c0_i32_0 = arith.constant 0 : i32
    %c0_i32_1 = arith.constant 0 : i32
    return %c0_i32, %c0_i32_0 : i32, i32
  }
  func.func @transform_3(%arg0: i32, %arg1: i32) -> (i32, i32, i32) {
    %c0_i32 = arith.constant 0 : i32
    %c0_i32_0 = arith.constant 0 : i32
    return %arg0, %c0_i32, %arg1 : i32, i32, i32
  }
  func.func @transform_4(%arg0: i32, %arg1: i32) -> (i32, i32, i32) {
    %c0_i32 = arith.constant 0 : i32
    %c0_i32_0 = arith.constant 0 : i32
    return %arg0, %c0_i32, %arg1 : i32, i32, i32
  }
}

</mosaic_0001>

<llo_original>
// kernel: tpu_custom_call.1
$region0: #{tpu_custom_call.1}
  #allocation0 [shape = 'u32[]', space=smem, size = 0x4, offset = 0x4, fixed_abs, tag = 'smem constant byte address 0x4 - core index']
  #allocation1 [shape = 'u32[144,128]{1,0:T(1,128)}', space=vmem, size = 0x12000, scoped, tag = 'internal scratch']
  %s0 = inlined_call_operand.vmem [shape: f32[16,32], index: 0, kind: input, shape index: {}]
  %s1 = inlined_call_operand.vmem [shape: f32[16,1], index: 1, kind: input, shape index: {}]
  %s2 = inlined_call_operand.vmem [shape: f32[16,1], index: 2, kind: input, shape index: {}]
  %s3 = inlined_call_operand.hbm [shape: f32[2,32,256], index: 3, kind: input, shape index: {}]
  %s4 = inlined_call_operand.hbm [shape: f32[2,16,256], index: 4, kind: output, shape index: {}]
  %s5 = sld [smem:[#allocation0]]
  $region53: #{tpu_custom_call.1} parent=0
    _
  %s7 = ssub.s32 1, %s5
  %s8 = scalar_select 0, %s7, %s5
  $region1: #{tpu_custom_call.1} parent=0
    #allocation2 [shape = 'u8[32768]{0}', space=vmem, size = 0x8000, scoped, tag = 'input window, operand 3']
    #allocation3 [shape = 's32[2]{0}', space=sflag, size = 0x8, scoped, tag = 'scoped memory for tpu_custom_call.1']
    #allocation4 [shape = 's32[2]{0}', space=sflag, size = 0x8, scoped, tag = 'scoped memory for tpu_custom_call.1']
    #allocation5 [shape = 'u8[16384]{0}', space=vmem, size = 0x4000, scoped, tag = 'output window, operand 0']
    %9 = vsyncpa [#allocation3], 0
    %s10 = scalar_lea.sflag [#allocation3], 1
    %11 = vsyncpa %s10, 0
    %12 = vsyncpa [#allocation4], 0
    %s13 = scalar_lea.sflag [#allocation4], 1
    %14 = vsyncpa %s13, 0
    loop: start=0, step=1, limit=6
    $region2: #{tpu_custom_call.1} parent=1 // loop_pre_header
      _
    $region3: #{tpu_custom_call.1} parent=1 // loop_header
      %s16 = sphi 0, %s20
      %p17 = scmp.ge.s32.totalorder %s16, 6
      %s23 = sphi 0, %s35
      %s24 = sphi 0, %s31
      %s25 = sphi 0, %s23
      %s26 = sphi 0, %s24
      %s27 = sphi 0, %s25
      %s28 = sphi 0, %s26
      %s36 = sphi 0, %s36
      %s38 = sphi 0, %s36
      %s39 = sphi 0, %s38
      %s53 = sphi 0, %s39
      %s57 = sphi 0, %s57
      %s59 = sphi 0, %s57
      %s60 = sphi 0, %s59
      %s74 = sphi 0, %s60
      %s78 = sphi 0, %s78
      %s80 = sphi 0, %s78
      %s81 = sphi 0, %s80
      %s95 = sphi 0, %s81
      %s103 = sphi 0, %s105
      %s106 = sphi 0, %s103
      %s107 = sphi 0, %s106
      %s123 = sphi 0, %s107
      %s131 = sphi 0, %s133
      %s134 = sphi 0, %s131
      %s135 = sphi 0, %s134
      %s151 = sphi 0, %s135
    $region4: #{tpu_custom_call.1} parent=1 // loop_header_branch
      %19 = sbr.rel (%p17) target = $region8
    $region5: #{tpu_custom_call.1} parent=1 // loop_body
      %s21 = ssub.s32 %s16, 1
      %s22 = ssub.s32 %s16, 2
      %s29 = sadd.s32 1, %s24
      %p30 = scmp.ge.s32.totalorder %s29, 2
      %s31 = scalar_select %p30, 0, %s29
      %s32 = sadd.s32 1, %s23
      %s33 = scalar_select %p30, %s32, %s23
      %p34 = scmp.ge.s32.totalorder %s33, 2
      %s35 = scalar_select %p34, 0, %s33
      %s37 = sadd.s32 %s36, 1
      %p40 = scmp.eq.s32.totalorder %s16, 3
      %p41 = scmp.ne.s32.totalorder %s36, %s38
      %p42 = scmp.eq.s32.totalorder %s16, 0
      %p43 = por %p41, %p42
      %p44 = scmp.ne.s32.totalorder %s36, %s38
      %p45 = scmp.eq.s32.totalorder %s21, 3
      %p46 = por %p44, %p45
      %p47 = scmp.ne.s32.totalorder %s38, %s39
      %p48 = scmp.eq.s32.totalorder %s21, 0
      %p49 = por %p47, %p48
      %p50 = scmp.ne.s32.totalorder %s38, %s39
      %p51 = scmp.eq.s32.totalorder %s22, 3
      %p52 = por %p50, %p51
      %p54 = scmp.ne.s32.totalorder %s39, %s53
      %p55 = scmp.eq.s32.totalorder %s22, 0
      %p56 = por %p54, %p55
      %s58 = sadd.s32 %s57, 1
      %p61 = scmp.eq.s32.totalorder %s16, 3
      %p62 = scmp.ne.s32.totalorder %s57, %s59
      %p63 = scmp.eq.s32.totalorder %s16, 0
      %p64 = por %p62, %p63
      %p65 = scmp.ne.s32.totalorder %s57, %s59
      %p66 = scmp.eq.s32.totalorder %s21, 3
      %p67 = por %p65, %p66
      %p68 = scmp.ne.s32.totalorder %s59, %s60
      %p69 = scmp.eq.s32.totalorder %s21, 0
      %p70 = por %p68, %p69
      %p71 = scmp.ne.s32.totalorder %s59, %s60
      %p72 = scmp.eq.s32.totalorder %s22, 3
      %p73 = por %p71, %p72
      %p75 = scmp.ne.s32.totalorder %s60, %s74
      %p76 = scmp.eq.s32.totalorder %s22, 0
      %p77 = por %p75, %p76
      %s79 = sadd.s32 %s78, 1
      %p82 = scmp.eq.s32.totalorder %s16, 3
      %p83 = scmp.ne.s32.totalorder %s78, %s80
      %p84 = scmp.eq.s32.totalorder %s16, 0
      %p85 = por %p83, %p84
      %p86 = scmp.ne.s32.totalorder %s78, %s80
      %p87 = scmp.eq.s32.totalorder %s21, 3
      %p88 = por %p86, %p87
      %p89 = scmp.ne.s32.totalorder %s80, %s81
      %p90 = scmp.eq.s32.totalorder %s21, 0
      %p91 = por %p89, %p90
      %p92 = scmp.ne.s32.totalorder %s80, %s81
      %p93 = scmp.eq.s32.totalorder %s22, 3
      %p94 = por %p92, %p93
      %p96 = scmp.ne.s32.totalorder %s81, %s95
      %p97 = scmp.eq.s32.totalorder %s22, 0
      %p98 = por %p96, %p97
      %s99 = ssub.s32 %s23, %s35
      %s100 = ssub.s32 %s24, %s31
      %s101 = sor.u32 %s99, %s100
      %p102 = scmp.eq.s32.totalorder %s101, 0
      %s104 = sadd.s32 %s103, 1
      %s105 = scalar_select %p102, %s103, %s104
      %p108 = pneg %p102
      %p109 = scmp.eq.s32.totalorder %s16, 3
      %p110 = por %p108, %p109
      %p111 = scmp.ne.s32.totalorder %s103, %s106
      %p112 = scmp.eq.s32.totalorder %s16, 0
      %p113 = por %p111, %p112
      %p114 = scmp.ne.s32.totalorder %s103, %s106
      %p115 = scmp.eq.s32.totalorder %s21, 3
      %p116 = por %p114, %p115
      %p117 = scmp.ne.s32.totalorder %s106, %s107
      %p118 = scmp.eq.s32.totalorder %s21, 0
      %p119 = por %p117, %p118
      %p120 = scmp.ne.s32.totalorder %s106, %s107
      %p121 = scmp.eq.s32.totalorder %s22, 3
      %p122 = por %p120, %p121
      %p124 = scmp.ne.s32.totalorder %s107, %s123
      %p125 = scmp.eq.s32.totalorder %s22, 0
      %p126 = por %p124, %p125
      %s127 = ssub.s32 %s23, %s35
      %s128 = ssub.s32 %s24, %s31
      %s129 = sor.u32 %s127, %s128
      %p130 = scmp.eq.s32.totalorder %s129, 0
      %s132 = sadd.s32 %s131, 1
      %s133 = scalar_select %p130, %s131, %s132
      %p136 = pneg %p130
      %p137 = scmp.eq.s32.totalorder %s16, 3
      %p138 = por %p136, %p137
      %p139 = scmp.ne.s32.totalorder %s131, %s134
      %p140 = scmp.eq.s32.totalorder %s16, 0
      %p141 = por %p139, %p140
      %p142 = scmp.ne.s32.totalorder %s131, %s134
      %p143 = scmp.eq.s32.totalorder %s21, 3
      %p144 = por %p142, %p143
      %p145 = scmp.ne.s32.totalorder %s134, %s135
      %p146 = scmp.eq.s32.totalorder %s21, 0
      %p147 = por %p145, %p146
      %p148 = scmp.ne.s32.totalorder %s134, %s135
      %p149 = scmp.eq.s32.totalorder %s22, 3
      %p150 = por %p148, %p149
      %p152 = scmp.ne.s32.totalorder %s135, %s151
      %p153 = scmp.eq.s32.totalorder %s22, 0
      %p154 = por %p152, %p153
      %p155 = scmp.le.s32.totalorder 1, %s16
      %p156 = scmp.lt.s32.totalorder %s16, 5
      %p157 = pnand %p155, %p156
      %p158 = pneg %p157
      // Predicated region
      $region9: #{tpu_custom_call.1} parent=5 // pred_check
        _
      $region10: #{tpu_custom_call.1} parent=5 // pred_check_branch
        %160 = sbr.rel (%p157) target = $region12
      $region11: #{tpu_custom_call.1} parent=5 // pred_region
        %s161 = ssub.s32 %s16, 1
        // Predicated region
        $region13: #{tpu_custom_call.1} parent=11 // pred_check
          %p162 = pneg %p49
        $region14: #{tpu_custom_call.1} parent=11 // pred_check_branch
          %164 = sbr.rel (%p162) target = $region16
        $region15: #{tpu_custom_call.1} parent=11 // pred_region
          _
        $region16: #{tpu_custom_call.1} parent=11 // pred_fallthru
          _
        // Predicated region
        $region17: #{tpu_custom_call.1} parent=11 // pred_check
          %p165 = pneg %p70
        $region18: #{tpu_custom_call.1} parent=11 // pred_check_branch
          %167 = sbr.rel (%p165) target = $region20
        $region19: #{tpu_custom_call.1} parent=11 // pred_region
          _
        $region20: #{tpu_custom_call.1} parent=11 // pred_fallthru
          _
        // Predicated region
        $region21: #{tpu_custom_call.1} parent=11 // pred_check
          %p168 = pneg %p91
        $region22: #{tpu_custom_call.1} parent=11 // pred_check_branch
          %170 = sbr.rel (%p168) target = $region24
        $region23: #{tpu_custom_call.1} parent=11 // pred_region
          _
        $region24: #{tpu_custom_call.1} parent=11 // pred_fallthru
          _
      $region12: #{tpu_custom_call.1} parent=5 // pred_fallthru
        _
      %p171 = scmp.lt.s32.totalorder %s16, 4
      // Predicated region
      $region25: #{tpu_custom_call.1} parent=5 // pred_check
        %p172 = pneg %p171
      $region26: #{tpu_custom_call.1} parent=5 // pred_check_branch
        %174 = sbr.rel (%p172) target = $region28
      $region27: #{tpu_custom_call.1} parent=5 // pred_region
        // Predicated region
        $region29: #{tpu_custom_call.1} parent=27 // pred_check
          %p175 = pneg %p113
        $region30: #{tpu_custom_call.1} parent=27 // pred_check_branch
          %177 = sbr.rel (%p175) target = $region32
        $region31: #{tpu_custom_call.1} parent=27 // pred_region
          %s178 = sand.u32 %s103, 1
          %s179 = scalar_lea.sflag [#allocation3], %s178
          %s180 = sand.u32 %s103, 1
          %s181 = smul.addr %s180, 32
          %s182 = scalar_lea.vmem [#allocation2], %s181
          %s184 = ssub.s32 512, 512
          %185 = vsyncadd %s179, %s184
          %s186 = smul.addr %s23, 8
          %s187 = sadd.s32 %s24, %s186
          %s188 = smul.addr %s187, 128
          %s189 = scalar_lea.hbm %s3, %s188
          %s190 = sshll.u32 %s182, 4
          %s191 = int_to_ptr.vmem [resolvable:$true] %s190
          %196 = dma.hbm_to_vmem [thread:$0]  %s189, 512, %s191, %s179, 256, 128, 8
        $region32: #{tpu_custom_call.1} parent=27 // pred_fallthru
          _
      $region28: #{tpu_custom_call.1} parent=5 // pred_fallthru
        _
      %p197 = scmp.le.s32.totalorder 1, %s16
      %p198 = scmp.lt.s32.totalorder %s16, 5
      %p199 = pnand %p197, %p198
      %p200 = pneg %p199
      // Predicated region
      $region33: #{tpu_custom_call.1} parent=5 // pred_check
        _
      $region34: #{tpu_custom_call.1} parent=5 // pred_check_branch
        %202 = sbr.rel (%p199) target = $region36
      $region35: #{tpu_custom_call.1} parent=5 // pred_region
        %s203 = ssub.s32 %s16, 1
        %s204 = sand.u32 %s106, 1
        %s205 = scalar_lea.sflag [#allocation3], %s204
        %s206 = sand.u32 %s106, 1
        %s207 = smul.addr %s206, 32
        %s208 = scalar_lea.vmem [#allocation2], %s207
        // Predicated region
        $region37: #{tpu_custom_call.1} parent=35 // pred_check
          %p209 = pneg %p119
        $region38: #{tpu_custom_call.1} parent=35 // pred_check_branch
          %211 = sbr.rel (%p209) target = $region40
        $region39: #{tpu_custom_call.1} parent=35 // pred_region
          %212 = dma.done %s205, 512
        $region40: #{tpu_custom_call.1} parent=35 // pred_fallthru
          _
        %p213 = pneg %p49
        %p214 = pneg %p46
        %p215 = pneg %p70
        %p216 = pneg %p67
        %p217 = pneg %p91
        %p218 = pneg %p88
        %s219 = sand.u32 %s106, 1
        %s220 = scalar_lea.sflag [#allocation3], %s219
        %s221 = sand.u32 %s106, 1
        %s222 = smul.addr %s221, 32
        %s223 = scalar_lea.vmem [#allocation2], %s222
        %p224 = pneg %p119
        %p225 = pneg %p116
        %p226 = pneg %p147
        %p227 = pneg %p144
        %s228 = sand.u32 %s134, 1
        %s229 = scalar_lea.sflag [#allocation4], %s228
        %s230 = sand.u32 %s134, 1
        %s231 = smul.addr %s230, 16
        %s232 = scalar_lea.vmem [#allocation5], %s231
        %v233 = vld [vmem:[%s0] sm:$0xff]
        %v234 = vld [vmem:[%s0 + $0x8] sm:$0xff]
        %v235 = vld [vmem:[%s208] sm:$0xff]
        %v236 = vld [vmem:[%s208 + $0x8] sm:$0xff]
        %v237 = vld [vmem:[%s208 + $0x10] sm:$0xff]
        %v238 = vld [vmem:[%s208 + $0x18] sm:$0xff]
        %vm239 = vcmask 261120
        %v241 = vsel %vm239, %v233, 0
        %v244 = vsel %vm239, %v234, 0
        %246 = vmatprep.subr.mxu0 0.0
        %247 = vmatpush1.msra.mxu0 %v235
        %248 = vmatprep.subr.mxu0 0.0
        %249 = vmatpush1.msra.mxu0 %v236
        %250 = vmatprep.subr.mxu0 0.0
        %251 = vmatpush1.msra.mxu0 %v237
        %252 = vmatprep.subr.mxu0 0.0
        %253 = vmatpush1.msra.mxu0 %v238
        %254 = vmatprep.subr.mxu0 0.0
        %255 = vmatpush1.msra.mxu0 0.0
        %256 = vmatprep.subr.mxu0 0.0
        %257 = vmatpush1.msra.mxu0 0.0
        %258 = vmatprep.subr.mxu0 0.0
        %259 = vmatpush1.msra.mxu0 0.0
        %260 = vmatprep.subr.mxu0 0.0
        %261 = vmatpush1.msra.mxu0 0.0
        %262 = vmatprep.subr.mxu0 0.0
        %263 = vmatpush1.msra.mxu0 0.0
        %264 = vmatprep.subr.mxu0 0.0
        %265 = vmatpush1.msra.mxu0 0.0
        %266 = vmatprep.subr.mxu0 0.0
        %267 = vmatpush1.msra.mxu0 0.0
        %268 = vmatprep.subr.mxu0 0.0
        %269 = vmatpush1.msra.mxu0 0.0
        %270 = vmatprep.subr.mxu0 0.0
        %271 = vmatpush1.msra.mxu0 0.0
        %272 = vmatprep.subr.mxu0 0.0
        %273 = vmatpush1.msra.mxu0 0.0
        %274 = vmatprep.subr.mxu0 0.0
        %275 = vmatpush1.msra.mxu0 0.0
        %276 = vmatprep.subr.mxu0 0.0
        %277 = vmatpush1.msra.mxu0 0.0
        %278 = vmatprep.subr.mxu0 0.0
        %279 = vmatpush1.msra.mxu0 0.0
        %280 = vmatprep.subr.mxu0 0.0
        %281 = vmatpush1.msra.mxu0 0.0
        %282 = vmatprep.subr.mxu0 0.0
        %283 = vmatpush1.msra.mxu0 0.0
        %284 = vmatprep.subr.mxu0 0.0
        %285 = vmatpush1.msra.mxu0 0.0
        %286 = vmatprep.subr.mxu0 0.0
        %287 = vmatpush1.msra.mxu0 0.0
        %288 = vmatprep.subr.mxu0 0.0
        %289 = vmatpush1.msra.mxu0 0.0
        %290 = vmatprep.subr.mxu0 0.0
        %291 = vmatpush1.msra.mxu0 0.0
        %292 = vmatprep.subr.mxu0 0.0
        %293 = vmatpush1.msra.mxu0 0.0
        %294 = vmatprep.subr.mxu0 0.0
        %295 = vmatpush1.msra.mxu0 0.0
        %296 = vmatprep.subr.mxu0 0.0
        %297 = vmatpush1.msra.mxu0 0.0
        %298 = vmatprep.subr.mxu0 0.0
        %299 = vmatpush1.msra.mxu0 0.0
        %300 = vmatprep.subr.mxu0 0.0
        %301 = vmatpush1.msra.mxu0 0.0
        %302 = vmatprep.subr.mxu0 0.0
        %303 = vmatpush1.msra.mxu0 0.0
        %304 = vmatprep.subr.mxu0 0.0
        %305 = vmatpush1.msra.mxu0 0.0
        %306 = vmatprep.subr.mxu0 0.0
        %307 = vmatpush1.msra.mxu0 0.0
        %308 = vmatprep.subr.mxu0 0.0
        %309 = vmatpush1.msra.mxu0 0.0
        %310 = vmatprep.mubr.f32.mxu0 0.0
        %311 = vmatmul.mubr.f32.gmra.mrb[0].mxu0 %v241
        %v312 = vpop.f32.mrb[0].mxu0
        %v313 = vadd.f32 0.0, %v312
        %v314 = vpop.f32.mrb[0].mxu0
        %315 = vmatprep.mubr.f32.mxu0 0.0
        %316 = vmatmul.mubr.f32.gmra.mrb[0].mxu0 %v244
        %v317 = vpop.f32.mrb[0].mxu0
        %v318 = vadd.f32 0.0, %v317
        %v319 = vpop.f32.mrb[0].mxu0
        %320 = vdwg.mxu0
        %v321 = vld [vmem:[%s1] sm:$0xff]
        %v322 = vld [vmem:[%s1 + $0x8] sm:$0xff]
        %324 = vset.pattern.permute.xlu0 0
        %325 = vperm.xlu0 %324, %v321
        %v326 = vpop.permute.xlu0 %325
        %329 = vset.pattern.permute.xlu0 0
        %330 = vperm.xlu0 %329, %v322
        %v331 = vpop.permute.xlu0 %330
        %v333 = vmul.f32 %v313, %v326
        %v334 = vmul.f32 %v318, %v331
        %v335 = vld [vmem:[%s2] sm:$0xff]
        %v336 = vld [vmem:[%s2 + $0x8] sm:$0xff]
        %338 = vset.pattern.permute.xlu0 0
        %339 = vperm.xlu0 %338, %v335
        %v340 = vpop.permute.xlu0 %339
        %343 = vset.pattern.permute.xlu0 0
        %344 = vperm.xlu0 %343, %v336
        %v345 = vpop.permute.xlu0 %344
        %v347 = vadd.f32 %v333, %v340
        %v348 = vadd.f32 %v334, %v345
        %349 = vst [vmem:[%s232] sm:$0xff] %v347
        %350 = vst [vmem:[%s232 + $0x8] sm:$0xff] %v348
        %s351 = sand.u32 %s134, 1
        %s352 = scalar_lea.sflag [#allocation4], %s351
        %s353 = sand.u32 %s134, 1
        %s354 = smul.addr %s353, 16
        %s355 = scalar_lea.vmem [#allocation5], %s354
        // Predicated region
        $region41: #{tpu_custom_call.1} parent=35 // pred_check
          %p356 = pneg %p144
        $region42: #{tpu_custom_call.1} parent=35 // pred_check_branch
          %358 = sbr.rel (%p356) target = $region44
        $region43: #{tpu_custom_call.1} parent=35 // pred_region
          %s360 = ssub.s32 256, 256
          %361 = vsyncadd %s352, %s360
          %s362 = smul.addr %s25, 4
          %s363 = sadd.s32 %s26, %s362
          %s364 = smul.addr %s363, 128
          %s365 = scalar_lea.hbm %s4, %s364
          %s366 = sshll.u32 %s355, 4
          %s367 = int_to_ptr.vmem [resolvable:$true] %s366
          %372 = dma.vmem_to_hbm [thread:$0]  %s367, 256, %s365, %s352, 128, 256, 8
        $region44: #{tpu_custom_call.1} parent=35 // pred_fallthru
          _
      $region36: #{tpu_custom_call.1} parent=5 // pred_fallthru
        _
      %p373 = scmp.le.s32.totalorder 2, %s16
      // Predicated region
      $region45: #{tpu_custom_call.1} parent=5 // pred_check
        %p374 = pneg %p373
      $region46: #{tpu_custom_call.1} parent=5 // pred_check_branch
        %376 = sbr.rel (%p374) target = $region48
      $region47: #{tpu_custom_call.1} parent=5 // pred_region
        %s377 = ssub.s32 %s16, 2
        // Predicated region
        $region49: #{tpu_custom_call.1} parent=47 // pred_check
          %p378 = pneg %p150
        $region50: #{tpu_custom_call.1} parent=47 // pred_check_branch
          %380 = sbr.rel (%p378) target = $region52
        $region51: #{tpu_custom_call.1} parent=47 // pred_region
          %s381 = sand.u32 %s135, 1
          %s382 = scalar_lea.sflag [#allocation4], %s381
          %s383 = sand.u32 %s135, 1
          %s384 = smul.addr %s383, 16
          %s385 = scalar_lea.vmem [#allocation5], %s384
          %386 = dma.done %s382, 256
        $region52: #{tpu_custom_call.1} parent=47 // pred_fallthru
          _
      $region48: #{tpu_custom_call.1} parent=5 // pred_fallthru
        _
    $region6: #{tpu_custom_call.1} parent=1 // loop_footer
      %s20 = sadd.s32 1, %s16
    $region7: #{tpu_custom_call.1} parent=1 // loop_footer_branch
      %15 = sbr.rel target = $region3
    $region8: #{tpu_custom_call.1} parent=1 // loop_exit
      _
    %387 = vsyncpa [#allocation3], 1
    %s388 = scalar_lea.sflag [#allocation3], 1
    %389 = vsyncpa %s388, 1
    %390 = vsyncpa [#allocation4], 1
    %s391 = scalar_lea.sflag [#allocation4], 1
    %392 = vsyncpa %s391, 1

</llo_original>
